<compile_context>
chip_gen: v7x
topology: tpu7x:2x2x1
jax: 0.10.0
libtpu: 0.0.40
codegen_flags: <defaults>
</compile_context>

<pallas_src>
import jax
import jax.numpy as jnp
from jax.experimental import pallas as pl
from jax.experimental.pallas import tpu as pltpu


def _make_kld_kernel(inv_t: float, hw_total: int, t_hw: int, needs_mask: bool):
    def kld_kernel(pred_ref, target_ref, out_ref):
        # pred_ref/target_ref: (1, C, t_hw); channels on sublanes, spatial on lanes.
        x = pred_ref[0].astype(jnp.float32) * inv_t            # (C, t_hw)

        # numerically-stable log-softmax over the channel (sublane) axis
        m = jnp.max(x, axis=0, keepdims=True)                  # (1, t_hw)
        z = x - m
        lse = jnp.log(jnp.sum(jnp.exp(z), axis=0, keepdims=True))
        log_p = z - lse                                         # (C, t_hw)

        t = target_ref[0].astype(jnp.float32)
        valid_t = t > 0
        # PyTorch KLDivLoss (non-log target): t * (log t - log_p), 0 where t <= 0.
        pointwise = jnp.where(
            valid_t, t * (jnp.log(jnp.where(valid_t, t, 1.0)) - log_p), 0.0
        )

        if needs_mask:
            # mask out-of-range lanes of the ragged tail block
            j = pl.program_id(1)
            col = jax.lax.broadcasted_iota(jnp.int32, pointwise.shape, 1)
            limit = hw_total - j * t_hw
            pointwise = jnp.where(col < limit, pointwise, 0.0)

        # one per-tile partial sum; written broadcast into a full (8,128) slot
        part = jnp.sum(pointwise)
        out_ref[...] = jnp.full(out_ref.shape, part, dtype=jnp.float32)

    return kld_kernel


def kld_loss(pred, target, temp_factor: float = 4.0, loss_weight: float = 1.0):
    """Pallas equivalent of KLDLoss.forward (loss_weight unused, as in reference)."""
    assert pred.shape == target.shape
    N = pred.shape[0]
    C = pred.shape[1]
    HW = 1
    for d in pred.shape[2:]:
        HW *= d
    HW = max(HW, 1)

    # Free contiguous reshape (no HBM transpose): channels stay on dim 1,
    # flattened spatial goes to the lane axis.
    p = pred.reshape(N, C, HW)
    t = target.reshape(N, C, HW)

    # Tile selection: ~1 MiB per input block (lane dim a multiple of 128),
    # => 2 inputs x 2 pipeline buffers ~= 4 MiB VMEM, safe on all generations.
    itemsize = pred.dtype.itemsize
    target_bytes = 1 << 20
    target_cols = max(128, target_bytes // max(1, C * itemsize))
    if HW < 128:
        t_hw = HW                                   # full-extent block (allowed)
    else:
        t_hw = min((HW // 128) * 128, (target_cols // 128) * 128)
    n_hw = pl.cdiv(HW, t_hw)
    needs_mask = (HW % t_hw) != 0

    inv_t = 1.0 / float(temp_factor)
    kernel = _make_kld_kernel(inv_t, HW, t_hw, needs_mask)

    partials = pl.pallas_call(
        kernel,
        out_shape=jax.ShapeDtypeStruct((N, n_hw, 8, 128), jnp.float32),
        grid_spec=pltpu.PrefetchScalarGridSpec(
            num_scalar_prefetch=0,
            grid=(N, n_hw),
            in_specs=[
                pl.BlockSpec((1, C, t_hw), lambda n, j: (n, 0, j)),
                pl.BlockSpec((1, C, t_hw), lambda n, j: (n, 0, j)),
            ],
            out_specs=pl.BlockSpec((1, 1, 8, 128), lambda n, j: (n, j, 0, 0)),
        ),
        compiler_params=pltpu.CompilerParams(
            dimension_semantics=("parallel", "parallel"),
            vmem_limit_bytes=32 * 1024 * 1024,
        ),
    )(p, t)

    # tiny final reduction over per-tile partial sums, then T^2 / batch scale
    total = jnp.sum(partials[:, :, 0, 0])
    return total * (float(temp_factor) ** 2 / float(N))


def _reference_kld(pred, target, temp_factor=4.0):
    x = pred.astype(jnp.float32) / temp_factor
    log_p = jax.nn.log_softmax(x, axis=1)
    tt = target.astype(jnp.float32)
    pw = jnp.where(tt > 0, tt * (jnp.log(jnp.where(tt > 0, tt, 1.0)) - log_p), 0.0)
    return jnp.sum(pw) * temp_factor ** 2 / pred.shape[0]


if __name__ == "__main__":
    key = jax.random.PRNGKey(0)
    k1, k2 = jax.random.split(key)

    N, C, H, W = 2, 4, 16, 16
    pred = jax.random.normal(k1, (N, C, H, W), dtype=jnp.float32)
    # target is a probability distribution over the channel axis (dim=1)
    target_logits = jax.random.normal(k2, (N, C, H, W), dtype=jnp.float32)
    target = jax.nn.softmax(target_logits, axis=1)

    loss = kld_loss(pred, target, temp_factor=4.0)
    loss = jax.block_until_ready(loss)

    ref = _reference_kld(pred, target, temp_factor=4.0)
    assert jnp.allclose(loss, ref, rtol=1e-5, atol=1e-5), (loss, ref)

    print("KERNEL_OK")
</pallas_src>

<mosaic_0001>
module attributes {stable_mosaic.version = 11 : i64} {
  func.func @kld_kernel(%arg0: i32, %arg1: i32, %arg2: memref<1x4x256xf32, #tpu.memory_space<vmem>>, %arg3: memref<1x4x256xf32, #tpu.memory_space<vmem>>, %arg4: memref<1x1x8x128xf32, #tpu.memory_space<vmem>>) attributes {dimension_semantics = [#tpu.dimension_semantics<parallel>, #tpu.dimension_semantics<parallel>], iteration_bounds = array<i64: 2, 1>, scalar_prefetch = 0 : i64, scratch_operands = 0 : i64, tpu.core_type = #tpu.core_type<tc>, window_params = [{transform_indices = @transform_0, window_bounds = array<i64: 1, 4, 256>}, {transform_indices = @transform_1, window_bounds = array<i64: 1, 4, 256>}, {transform_indices = @transform_2, window_bounds = array<i64: 1, 1, 8, 128>}]} {
    %c0 = arith.constant 0 : index
    %c0_0 = arith.constant 0 : index
    %c0_1 = arith.constant 0 : index
    %0 = vector.load %arg2[%c0, %c0_0, %c0_1] : memref<1x4x256xf32, #tpu.memory_space<vmem>>, vector<1x4x256xf32>
    %1 = vector.shape_cast %0 : vector<1x4x256xf32> to vector<4x256xf32>
    %cst = arith.constant 2.500000e-01 : f32
    %2 = vector.broadcast %cst : f32 to vector<4x256xf32>
    %3 = arith.mulf %1, %2 : vector<4x256xf32>
    %cst_2 = arith.constant dense<0xFF800000> : vector<256xf32>
    %4 = vector.multi_reduction <maximumf>, %3, %cst_2 [0] : vector<4x256xf32> to vector<256xf32>
    %5 = vector.shape_cast %4 : vector<256xf32> to vector<1x256xf32>
    %6 = vector.broadcast %5 : vector<1x256xf32> to vector<4x256xf32>
    %7 = arith.subf %3, %6 : vector<4x256xf32>
    %8 = math.exp %7 : vector<4x256xf32>
    %cst_3 = arith.constant dense<0.000000e+00> : vector<256xf32>
    %9 = vector.multi_reduction <add>, %8, %cst_3 [0] : vector<4x256xf32> to vector<256xf32>
    %10 = vector.shape_cast %9 : vector<256xf32> to vector<1x256xf32>
    %11 = math.log %10 : vector<1x256xf32>
    %12 = vector.broadcast %11 : vector<1x256xf32> to vector<4x256xf32>
    %13 = arith.subf %7, %12 : vector<4x256xf32>
    %c0_4 = arith.constant 0 : index
    %c0_5 = arith.constant 0 : index
    %c0_6 = arith.constant 0 : index
    %14 = vector.load %arg3[%c0_4, %c0_5, %c0_6] : memref<1x4x256xf32, #tpu.memory_space<vmem>>, vector<1x4x256xf32>
    %15 = vector.shape_cast %14 : vector<1x4x256xf32> to vector<4x256xf32>
    %cst_7 = arith.constant 0.000000e+00 : f32
    %16 = vector.broadcast %cst_7 : f32 to vector<4x256xf32>
    %17 = arith.cmpf ogt, %15, %16 : vector<4x256xf32>
    %cst_8 = arith.constant 1.000000e+00 : f32
    %18 = vector.broadcast %cst_8 : f32 to vector<4x256xf32>
    %19 = arith.select %17, %15, %18 : vector<4x256xi1>, vector<4x256xf32>
    %20 = math.log %19 : vector<4x256xf32>
    %21 = arith.subf %20, %13 : vector<4x256xf32>
    %22 = arith.mulf %15, %21 : vector<4x256xf32>
    %cst_9 = arith.constant 0.000000e+00 : f32
    %23 = vector.broadcast %cst_9 : f32 to vector<4x256xf32>
    %24 = arith.select %17, %22, %23 : vector<4x256xi1>, vector<4x256xf32>
    %25 = vector.shape_cast %24 : vector<4x256xf32> to vector<1x4x256xf32>
    %cst_10 = arith.constant dense<0.000000e+00> : vector<1xf32>
    %26 = vector.multi_reduction <add>, %25, %cst_10 [1, 2] : vector<1x4x256xf32> to vector<1xf32>
    %27 = vector.shape_cast %26 : vector<1xf32> to vector<1x1x1xf32>
    %28 = vector.extract %27[0, 0, 0] : f32 from vector<1x1x1xf32>
    %29 = vector.broadcast %28 : f32 to vector<1x1x8x128xf32>
    %c0_11 = arith.constant 0 : index
    %c0_12 = arith.constant 0 : index
    %c0_13 = arith.constant 0 : index
    %c0_14 = arith.constant 0 : index
    %30 = vector.load %arg4[%c0_11, %c0_12, %c0_13, %c0_14] : memref<1x1x8x128xf32, #tpu.memory_space<vmem>>, vector<1x1x8x128xf32>
    tpu.vector_store %arg4[%c0_11, %c0_12, %c0_13, %c0_14], %29 {strides = array<i32>} : memref<1x1x8x128xf32, #tpu.memory_space<vmem>>, vector<1x1x8x128xf32>,
    return
  }
  func.func @transform_0(%arg0: i32, %arg1: i32) -> (i32, i32, i32) {
    %c0_i32 = arith.constant 0 : i32
    %c0_i32_0 = arith.constant 0 : i32
    return %arg0, %c0_i32, %arg1 : i32, i32, i32
  }
  func.func @transform_1(%arg0: i32, %arg1: i32) -> (i32, i32, i32) {
    %c0_i32 = arith.constant 0 : i32
    %c0_i32_0 = arith.constant 0 : i32
    return %arg0, %c0_i32, %arg1 : i32, i32, i32
  }
  func.func @transform_2(%arg0: i32, %arg1: i32) -> (i32, i32, i32, i32) {
    %c0_i32 = arith.constant 0 : i32
    %c0_i32_0 = arith.constant 0 : i32
    %c0_i32_1 = arith.constant 0 : i32
    return %arg0, %arg1, %c0_i32, %c0_i32_0 : i32, i32, i32, i32
  }
}

</mosaic_0001>

<llo_original>
// kernel: tpu_custom_call.1
$region0: #{tpu_custom_call.1}
  #allocation0 [shape = 'u32[]', space=smem, size = 0x4, offset = 0x4, fixed_abs, tag = 'smem constant byte address 0x4 - core index']
  #allocation1 [shape = 'u32[144,128]{1,0:T(1,128)}', space=vmem, size = 0x12000, scoped, tag = 'internal scratch']
  %s0 = inlined_call_operand.hbm [shape: f32[2,4,256], index: 0, kind: input, shape index: {}]
  %s1 = inlined_call_operand.hbm [shape: f32[2,4,256], index: 1, kind: input, shape index: {}]
  %s2 = inlined_call_operand.hbm [shape: f32[2,1,8,128], index: 2, kind: output, shape index: {}]
  %s3 = sld [smem:[#allocation0]]
  $region49: #{tpu_custom_call.1} parent=0
    _
  %s5 = ssub.s32 1, %s3
  %s6 = scalar_select 0, %s5, %s3
  $region1: #{tpu_custom_call.1} parent=0
    #allocation2 [shape = 'u8[8192]{0}', space=vmem, size = 0x2000, scoped, tag = 'input window, operand 0']
    #allocation3 [shape = 's32[2]{0}', space=sflag, size = 0x8, scoped, tag = 'scoped memory for tpu_custom_call.1']
    #allocation4 [shape = 's32[2]{0}', space=sflag, size = 0x8, scoped, tag = 'scoped memory for tpu_custom_call.1']
    #allocation5 [shape = 'u8[8192]{0}', space=vmem, size = 0x2000, scoped, tag = 'input window, operand 1']
    #allocation6 [shape = 's32[2]{0}', space=sflag, size = 0x8, scoped, tag = 'scoped memory for tpu_custom_call.1']
    #allocation7 [shape = 'u8[8192]{0}', space=vmem, size = 0x2000, scoped, tag = 'output window, operand 0']
    %7 = vsyncpa [#allocation3], 0
    %s8 = scalar_lea.sflag [#allocation3], 1
    %9 = vsyncpa %s8, 0
    %10 = vsyncpa [#allocation6], 0
    %s11 = scalar_lea.sflag [#allocation6], 1
    %12 = vsyncpa %s11, 0
    %13 = vsyncpa [#allocation4], 0
    %s14 = scalar_lea.sflag [#allocation4], 1
    %15 = vsyncpa %s14, 0
    loop: start=0, step=1, limit=4
    $region2: #{tpu_custom_call.1} parent=1 // loop_pre_header
      _
    $region3: #{tpu_custom_call.1} parent=1 // loop_header
      %s17 = sphi 0, %s21
      %p18 = scmp.ge.s32.totalorder %s17, 4
      %s24 = sphi 0, %s36
      %s25 = sphi 0, %s32
      %s26 = sphi 0, %s24
      %s27 = sphi 0, %s25
      %s28 = sphi 0, %s26
      %s29 = sphi 0, %s27
      %s41 = sphi 0, %s43
      %s44 = sphi 0, %s41
      %s45 = sphi 0, %s44
      %s61 = sphi 0, %s45
      %s69 = sphi 0, %s71
      %s72 = sphi 0, %s69
      %s73 = sphi 0, %s72
      %s89 = sphi 0, %s73
      %s97 = sphi 0, %s99
      %s100 = sphi 0, %s97
      %s101 = sphi 0, %s100
      %s117 = sphi 0, %s101
    $region4: #{tpu_custom_call.1} parent=1 // loop_header_branch
      %20 = sbr.rel (%p18) target = $region8
    $region5: #{tpu_custom_call.1} parent=1 // loop_body
      %s22 = ssub.s32 %s17, 1
      %s23 = ssub.s32 %s17, 2
      %s30 = sadd.s32 1, %s25
      %p31 = scmp.ge.s32.totalorder %s30, 1
      %s32 = scalar_select %p31, 0, %s30
      %s33 = sadd.s32 1, %s24
      %s34 = scalar_select %p31, %s33, %s24
      %p35 = scmp.ge.s32.totalorder %s34, 2
      %s36 = scalar_select %p35, 0, %s34
      %s37 = ssub.s32 %s24, %s36
      %s38 = ssub.s32 %s25, %s32
      %s39 = sor.u32 %s37, %s38
      %p40 = scmp.eq.s32.totalorder %s39, 0
      %s42 = sadd.s32 %s41, 1
      %s43 = scalar_select %p40, %s41, %s42
      %p46 = pneg %p40
      %p47 = scmp.eq.s32.totalorder %s17, 1
      %p48 = por %p46, %p47
      %p49 = scmp.ne.s32.totalorder %s41, %s44
      %p50 = scmp.eq.s32.totalorder %s17, 0
      %p51 = por %p49, %p50
      %p52 = scmp.ne.s32.totalorder %s41, %s44
      %p53 = scmp.eq.s32.totalorder %s22, 1
      %p54 = por %p52, %p53
      %p55 = scmp.ne.s32.totalorder %s44, %s45
      %p56 = scmp.eq.s32.totalorder %s22, 0
      %p57 = por %p55, %p56
      %p58 = scmp.ne.s32.totalorder %s44, %s45
      %p59 = scmp.eq.s32.totalorder %s23, 1
      %p60 = por %p58, %p59
      %p62 = scmp.ne.s32.totalorder %s45, %s61
      %p63 = scmp.eq.s32.totalorder %s23, 0
      %p64 = por %p62, %p63
      %s65 = ssub.s32 %s24, %s36
      %s66 = ssub.s32 %s25, %s32
      %s67 = sor.u32 %s65, %s66
      %p68 = scmp.eq.s32.totalorder %s67, 0
      %s70 = sadd.s32 %s69, 1
      %s71 = scalar_select %p68, %s69, %s70
      %p74 = pneg %p68
      %p75 = scmp.eq.s32.totalorder %s17, 1
      %p76 = por %p74, %p75
      %p77 = scmp.ne.s32.totalorder %s69, %s72
      %p78 = scmp.eq.s32.totalorder %s17, 0
      %p79 = por %p77, %p78
      %p80 = scmp.ne.s32.totalorder %s69, %s72
      %p81 = scmp.eq.s32.totalorder %s22, 1
      %p82 = por %p80, %p81
      %p83 = scmp.ne.s32.totalorder %s72, %s73
      %p84 = scmp.eq.s32.totalorder %s22, 0
      %p85 = por %p83, %p84
      %p86 = scmp.ne.s32.totalorder %s72, %s73
      %p87 = scmp.eq.s32.totalorder %s23, 1
      %p88 = por %p86, %p87
      %p90 = scmp.ne.s32.totalorder %s73, %s89
      %p91 = scmp.eq.s32.totalorder %s23, 0
      %p92 = por %p90, %p91
      %s93 = ssub.s32 %s24, %s36
      %s94 = ssub.s32 %s25, %s32
      %s95 = sor.u32 %s93, %s94
      %p96 = scmp.eq.s32.totalorder %s95, 0
      %s98 = sadd.s32 %s97, 1
      %s99 = scalar_select %p96, %s97, %s98
      %p102 = pneg %p96
      %p103 = scmp.eq.s32.totalorder %s17, 1
      %p104 = por %p102, %p103
      %p105 = scmp.ne.s32.totalorder %s97, %s100
      %p106 = scmp.eq.s32.totalorder %s17, 0
      %p107 = por %p105, %p106
      %p108 = scmp.ne.s32.totalorder %s97, %s100
      %p109 = scmp.eq.s32.totalorder %s22, 1
      %p110 = por %p108, %p109
      %p111 = scmp.ne.s32.totalorder %s100, %s101
      %p112 = scmp.eq.s32.totalorder %s22, 0
      %p113 = por %p111, %p112
      %p114 = scmp.ne.s32.totalorder %s100, %s101
      %p115 = scmp.eq.s32.totalorder %s23, 1
      %p116 = por %p114, %p115
      %p118 = scmp.ne.s32.totalorder %s101, %s117
      %p119 = scmp.eq.s32.totalorder %s23, 0
      %p120 = por %p118, %p119
      %p121 = scmp.le.s32.totalorder 1, %s17
      %p122 = scmp.lt.s32.totalorder %s17, 3
      %p123 = pnand %p121, %p122
      %p124 = pneg %p123
      // Predicated region
      $region9: #{tpu_custom_call.1} parent=5 // pred_check
        _
      $region10: #{tpu_custom_call.1} parent=5 // pred_check_branch
        %126 = sbr.rel (%p123) target = $region12
      $region11: #{tpu_custom_call.1} parent=5 // pred_region
        %s127 = ssub.s32 %s17, 1
      $region12: #{tpu_custom_call.1} parent=5 // pred_fallthru
        _
      %p128 = scmp.lt.s32.totalorder %s17, 2
      // Predicated region
      $region13: #{tpu_custom_call.1} parent=5 // pred_check
        %p129 = pneg %p128
      $region14: #{tpu_custom_call.1} parent=5 // pred_check_branch
        %131 = sbr.rel (%p129) target = $region16
      $region15: #{tpu_custom_call.1} parent=5 // pred_region
        // Predicated region
        $region17: #{tpu_custom_call.1} parent=15 // pred_check
          %p132 = pneg %p51
        $region18: #{tpu_custom_call.1} parent=15 // pred_check_branch
          %134 = sbr.rel (%p132) target = $region20
        $region19: #{tpu_custom_call.1} parent=15 // pred_region
          %s135 = sand.u32 %s41, 1
          %s136 = scalar_lea.sflag [#allocation3], %s135
          %s137 = sand.u32 %s41, 1
          %s138 = smul.addr %s137, 8
          %s139 = scalar_lea.vmem [#allocation2], %s138
          %s140 = smul.u32 2, %s25
          %s142 = ssub.s32 128, 128
          %143 = vsyncadd %s136, %s142
          %s144 = smul.addr %s24, 2
          %s145 = sadd.s32 %s140, %s144
          %s146 = smul.addr %s145, 64
          %s147 = scalar_lea.hbm %s0, %s146
          %s149 = sshll.u32 %s139, 4
          %s150 = int_to_ptr.vmem [resolvable:$true] %s149
          %152 = dma.hbm_to_vmem [thread:$0]  %s147, 128, %s150, %s136
        $region20: #{tpu_custom_call.1} parent=15 // pred_fallthru
          _
        // Predicated region
        $region21: #{tpu_custom_call.1} parent=15 // pred_check
          %p153 = pneg %p79
        $region22: #{tpu_custom_call.1} parent=15 // pred_check_branch
          %155 = sbr.rel (%p153) target = $region24
        $region23: #{tpu_custom_call.1} parent=15 // pred_region
          %s156 = sand.u32 %s69, 1
          %s157 = scalar_lea.sflag [#allocation6], %s156
          %s158 = sand.u32 %s69, 1
          %s159 = smul.addr %s158, 8
          %s160 = scalar_lea.vmem [#allocation5], %s159
          %s161 = smul.u32 2, %s25
          %s163 = ssub.s32 128, 128
          %164 = vsyncadd %s157, %s163
          %s165 = smul.addr %s24, 2
          %s166 = sadd.s32 %s161, %s165
          %s167 = smul.addr %s166, 64
          %s168 = scalar_lea.hbm %s1, %s167
          %s170 = sshll.u32 %s160, 4
          %s171 = int_to_ptr.vmem [resolvable:$true] %s170
          %173 = dma.hbm_to_vmem [thread:$0]  %s168, 128, %s171, %s157
        $region24: #{tpu_custom_call.1} parent=15 // pred_fallthru
          _
      $region16: #{tpu_custom_call.1} parent=5 // pred_fallthru
        _
      %p174 = scmp.le.s32.totalorder 1, %s17
      %p175 = scmp.lt.s32.totalorder %s17, 3
      %p176 = pnand %p174, %p175
      %p177 = pneg %p176
      // Predicated region
      $region25: #{tpu_custom_call.1} parent=5 // pred_check
        _
      $region26: #{tpu_custom_call.1} parent=5 // pred_check_branch
        %179 = sbr.rel (%p176) target = $region28
      $region27: #{tpu_custom_call.1} parent=5 // pred_region
        %s180 = ssub.s32 %s17, 1
        %s181 = sand.u32 %s44, 1
        %s182 = scalar_lea.sflag [#allocation3], %s181
        %s183 = sand.u32 %s44, 1
        %s184 = smul.addr %s183, 8
        %s185 = scalar_lea.vmem [#allocation2], %s184
        // Predicated region
        $region29: #{tpu_custom_call.1} parent=27 // pred_check
          %p186 = pneg %p57
        $region30: #{tpu_custom_call.1} parent=27 // pred_check_branch
          %188 = sbr.rel (%p186) target = $region32
        $region31: #{tpu_custom_call.1} parent=27 // pred_region
          %189 = dma.done %s182, 128
        $region32: #{tpu_custom_call.1} parent=27 // pred_fallthru
          _
        %s190 = sand.u32 %s72, 1
        %s191 = scalar_lea.sflag [#allocation6], %s190
        %s192 = sand.u32 %s72, 1
        %s193 = smul.addr %s192, 8
        %s194 = scalar_lea.vmem [#allocation5], %s193
        // Predicated region
        $region33: #{tpu_custom_call.1} parent=27 // pred_check
          %p195 = pneg %p85
        $region34: #{tpu_custom_call.1} parent=27 // pred_check_branch
          %197 = sbr.rel (%p195) target = $region36
        $region35: #{tpu_custom_call.1} parent=27 // pred_region
          %198 = dma.done %s191, 128
        $region36: #{tpu_custom_call.1} parent=27 // pred_fallthru
          _
        %s199 = sand.u32 %s44, 1
        %s200 = scalar_lea.sflag [#allocation3], %s199
        %s201 = sand.u32 %s44, 1
        %s202 = smul.addr %s201, 8
        %s203 = scalar_lea.vmem [#allocation2], %s202
        %p204 = pneg %p57
        %p205 = pneg %p54
        %s206 = sand.u32 %s72, 1
        %s207 = scalar_lea.sflag [#allocation6], %s206
        %s208 = sand.u32 %s72, 1
        %s209 = smul.addr %s208, 8
        %s210 = scalar_lea.vmem [#allocation5], %s209
        %p211 = pneg %p85
        %p212 = pneg %p82
        %p213 = pneg %p113
        %p214 = pneg %p110
        %s215 = sand.u32 %s100, 1
        %s216 = scalar_lea.sflag [#allocation4], %s215
        %s217 = sand.u32 %s100, 1
        %s218 = smul.addr %s217, 8
        %s219 = scalar_lea.vmem [#allocation7], %s218
        %s220 = smul.u32 2, %s27
        %s221 = smul.u32 2, %s27
        %v222 = vld [vmem:[%s185] sm:$0xff]
        %v223 = vmul.f32 %v222, 0.25
        %v225 = vcombine.high %v223, %v223
        %vm227 = vcmask 1043456
        %v228 = vsel %vm227, %v223, -inf
        %v229 = vrot.slane %v228, 4
        %v230 = vmax.f32 %v228, %v229
        %v231 = vrot.slane %v230, 2
        %v232 = vmax.f32 %v230, %v231
        %v233 = vrot.slane %v232, 1
        %v234 = vmax.f32 %v232, %v233
        %v235 = vsel %vm227, %v225, -inf
        %v236 = vrot.slane %v235, 4
        %v237 = vmax.f32 %v235, %v236
        %v238 = vrot.slane %v237, 2
        %v239 = vmax.f32 %v237, %v238
        %v240 = vrot.slane %v239, 1
        %v241 = vmax.f32 %v239, %v240
        %v244 = vcombine.low %v234, %v241
        %v246 = vsub.f32 %v223, %v244
        %v247 = vmul.f32 %v246, 1.442695
        %v248 = vpow.pop %v247
        %v250 = vcombine.high %v248, %v248
        %v252 = vsel %vm227, %v248, 0.0
        %v253 = vrot.slane %v252, 4
        %v254 = vadd.f32 %v252, %v253
        %v255 = vrot.slane %v254, 2
        %v256 = vadd.f32 %v254, %v255
        %v257 = vrot.slane %v256, 1
        %v258 = vadd.f32 %v256, %v257
        %v259 = vsel %vm227, %v250, 0.0
        %v260 = vrot.slane %v259, 4
        %v261 = vadd.f32 %v259, %v260
        %v262 = vrot.slane %v261, 2
        %v263 = vadd.f32 %v261, %v262
        %v264 = vrot.slane %v263, 1
        %v265 = vadd.f32 %v263, %v264
        %v266 = vlog2.pop %v258
        %v267 = vmul.f32 %v266, 0.6931472
        %v268 = vlog2.pop %v265
        %v269 = vmul.f32 %v268, 0.6931472
        %v272 = vcombine.low %v267, %v269
        %v274 = vsub.f32 %v246, %v272
        %v275 = vld [vmem:[%s194] sm:$0xff]
        %vm276 = vcmp.gt.f32.partialorder %v275, 0.0
        %v277 = vsel %vm276, %v275, 1.0
        %v278 = vlog2.pop %v277
        %v279 = vmul.f32 %v278, 0.6931472
        %v280 = vsub.f32 %v279, %v274
        %v281 = vmul.f32 %v275, %v280
        %v282 = vsel %vm276, %v281, 0.0
        %v284 = vcombine.high %v282, %v282
        %v286 = vsel %vm227, %v282, 0.0
        %v287 = vsel %vm227, %v284, 0.0
        %v288 = vadd.f32 %v286, %v287
        %289 = vadd.xlane.f32.xlu0 %v288
        %v290 = vpop.xlane.xlu0 %289
        %v291 = vrot.slane %v290, 4
        %v292 = vadd.f32 %v290, %v291
        %v293 = vrot.slane %v292, 2
        %v294 = vadd.f32 %v292, %v293
        %v295 = vrot.slane %v294, 1
        %v296 = vadd.f32 %v294, %v295
        %s297 = vtos %v296
        %v298 = vstv %s297
        %299 = vst [vmem:[%s219] sm:$0xff] %v298
        %s300 = sand.u32 %s100, 1
        %s301 = scalar_lea.sflag [#allocation4], %s300
        %s302 = sand.u32 %s100, 1
        %s303 = smul.addr %s302, 8
        %s304 = scalar_lea.vmem [#allocation7], %s303
        // Predicated region
        $region37: #{tpu_custom_call.1} parent=27 // pred_check
          %p305 = pneg %p110
        $region38: #{tpu_custom_call.1} parent=27 // pred_check_branch
          %307 = sbr.rel (%p305) target = $region40
        $region39: #{tpu_custom_call.1} parent=27 // pred_region
          %s309 = ssub.s32 128, 128
          %310 = vsyncadd %s301, %s309
          %s311 = sadd.s32 %s27, %s26
          %s312 = smul.addr %s311, 128
          %s313 = scalar_lea.hbm %s2, %s312
          %s315 = sshll.u32 %s304, 4
          %s316 = int_to_ptr.vmem [resolvable:$true] %s315
          %318 = dma.vmem_to_hbm [thread:$0]  %s316, 128, %s313, %s301
        $region40: #{tpu_custom_call.1} parent=27 // pred_fallthru
          _
      $region28: #{tpu_custom_call.1} parent=5 // pred_fallthru
        _
      %p319 = scmp.le.s32.totalorder 2, %s17
      // Predicated region
      $region41: #{tpu_custom_call.1} parent=5 // pred_check
        %p320 = pneg %p319
      $region42: #{tpu_custom_call.1} parent=5 // pred_check_branch
        %322 = sbr.rel (%p320) target = $region44
      $region43: #{tpu_custom_call.1} parent=5 // pred_region
        %s323 = ssub.s32 %s17, 2
        // Predicated region
        $region45: #{tpu_custom_call.1} parent=43 // pred_check
          %p324 = pneg %p116
        $region46: #{tpu_custom_call.1} parent=43 // pred_check_branch
          %326 = sbr.rel (%p324) target = $region48
        $region47: #{tpu_custom_call.1} parent=43 // pred_region
          %s327 = sand.u32 %s101, 1
          %s328 = scalar_lea.sflag [#allocation4], %s327
          %s329 = sand.u32 %s101, 1
          %s330 = smul.addr %s329, 8
          %s331 = scalar_lea.vmem [#allocation7], %s330
          %332 = dma.done %s328, 128
        $region48: #{tpu_custom_call.1} parent=43 // pred_fallthru
          _
      $region44: #{tpu_custom_call.1} parent=5 // pred_fallthru
        _
    $region6: #{tpu_custom_call.1} parent=1 // loop_footer
      %s21 = sadd.s32 1, %s17
    $region7: #{tpu_custom_call.1} parent=1 // loop_footer_branch
      %16 = sbr.rel target = $region3
    $region8: #{tpu_custom_call.1} parent=1 // loop_exit
      _
    %333 = vsyncpa [#allocation3], 1
    %s334 = scalar_lea.sflag [#allocation3], 1
    %335 = vsyncpa %s334, 1
    %336 = vsyncpa [#allocation6], 1
    %s337 = scalar_lea.sflag [#allocation6], 1
    %338 = vsyncpa %s337, 1
    %339 = vsyncpa [#allocation4], 1
    %s340 = scalar_lea.sflag [#allocation4], 1
    %341 = vsyncpa %s340, 1

</llo_original>
